<compile_context>
chip_gen: v7x
topology: tpu7x:2x2x1
jax: 0.10.0
libtpu: 0.0.40
codegen_flags: <defaults>
</compile_context>

<pallas_src>
import jax
import jax.numpy as jnp
from jax.experimental import pallas as pl
from jax.experimental.pallas import tpu as pltpu


def _swiglu_split_kernel(v_ref, g_ref, o_ref):
    # value & gate arrive as separate lane-dense blocks; compute in f32 and
    # cast exactly once on the store.
    g = g_ref[...].astype(jnp.float32)
    v = v_ref[...].astype(jnp.float32)
    o_ref[...] = (g * jax.nn.sigmoid(g) * v).astype(o_ref.dtype)


def _swiglu_fused_kernel(x_ref, o_ref):
    # Fallback when `half` is not 128-aligned: full feature row per block
    # (block == full array dim on the lane axis), slice in-kernel.
    half = o_ref.shape[-1]
    v = x_ref[:, :half].astype(jnp.float32)
    g = x_ref[:, half:].astype(jnp.float32)
    o_ref[...] = (g * jax.nn.sigmoid(g) * v).astype(o_ref.dtype)


def _round_down(x: int, m: int) -> int:
    return (x // m) * m


def swiglu(x: jax.Array, *, block_rows: int = 512, block_cols: int = 2048) -> jax.Array:
    """SwiGLU over the last axis. x: [..., 2*half] -> [..., half]."""
    *lead, feat = x.shape
    assert feat % 2 == 0, "SwiGLU expects an even last dimension"
    half = feat // 2

    rows = 1
    for d in lead:
        rows *= d
    x2 = x.reshape(rows, feat)

    # Sublane alignment for the row tile: 8 (4-byte) / 16 (2-byte) / 32 (1-byte).
    itemsize = jnp.dtype(x.dtype).itemsize
    row_align = {4: 8, 2: 16, 1: 32}.get(itemsize, 8)
    if block_rows % row_align:
        block_rows = max(row_align, _round_down(block_rows, row_align))

    if rows <= row_align:
        tm = rows  # block == full array dim is always a legal block shape
    else:
        tm = min(block_rows, _round_down(rows, row_align))
    grid_rows = pl.cdiv(rows, tm)  # last block may be partial (masked by Pallas)

    if half % 128 == 0:
        # Lane-dense value/gate blocks + tiled feature axis.
        tn = _round_down(min(block_cols, half), 128)
        while half % tn != 0:  # terminates at 128 since 128 | half
            tn -= 128
        gate_off = half // tn  # gate starts `half` elements in = gate_off blocks

        out2 = pl.pallas_call(
            _swiglu_split_kernel,
            out_shape=jax.ShapeDtypeStruct((rows, half), x.dtype),
            grid_spec=pltpu.PrefetchScalarGridSpec(
                num_scalar_prefetch=0,
                grid=(grid_rows, half // tn),
                in_specs=[
                    pl.BlockSpec((tm, tn), lambda i, j: (i, j)),             # value
                    pl.BlockSpec((tm, tn), lambda i, j: (i, j + gate_off)),  # gate
                ],
                out_specs=pl.BlockSpec((tm, tn), lambda i, j: (i, j)),
            ),
            compiler_params=pltpu.CompilerParams(
                dimension_semantics=("parallel", "parallel"),
            ),
        )(x2, x2)
    else:
        # half not a multiple of 128: keep the whole feature row in one block.
        out2 = pl.pallas_call(
            _swiglu_fused_kernel,
            out_shape=jax.ShapeDtypeStruct((rows, half), x.dtype),
            grid_spec=pltpu.PrefetchScalarGridSpec(
                num_scalar_prefetch=0,
                grid=(grid_rows,),
                in_specs=[pl.BlockSpec((tm, feat), lambda i: (i, 0))],
                out_specs=pl.BlockSpec((tm, half), lambda i: (i, 0)),
            ),
            compiler_params=pltpu.CompilerParams(
                dimension_semantics=("parallel",),
            ),
        )(x2)

    return out2.reshape(*lead, half)


def _reference(x):
    half = x.shape[-1] // 2
    val, gate = x[..., :half], x[..., half:]
    return (jax.nn.silu(gate.astype(jnp.float32)) * val.astype(jnp.float32)).astype(x.dtype)


if __name__ == "__main__":
    key = jax.random.PRNGKey(0)
    k1, k2, k3, k4 = jax.random.split(key, 4)

    # 1) Main case: batch=2, seq=8, hidden=256 (half=128, lane-aligned split path).
    x1 = jax.random.normal(k1, (2, 8, 256), dtype=jnp.float32)
    o1 = jax.block_until_ready(swiglu(x1))
    r1 = _reference(x1)
    assert o1.shape == r1.shape
    assert jnp.allclose(o1, r1, atol=1e-5, rtol=1e-5), "f32 split-path mismatch"

    # 2) Multi-step grid + partial last row block (rows=148 not a tile multiple).
    x2 = jax.random.normal(k2, (4, 37, 512), dtype=jnp.float32)
    o2 = jax.block_until_ready(swiglu(x2, block_rows=144))
    r2 = _reference(x2)
    assert jnp.allclose(o2, r2, atol=1e-5, rtol=1e-5), "partial-block mismatch"

    # 3) Fallback path: half=96 (not a multiple of 128).
    x3 = jax.random.normal(k3, (2, 8, 192), dtype=jnp.float32)
    o3 = jax.block_until_ready(swiglu(x3))
    r3 = _reference(x3)
    assert jnp.allclose(o3, r3, atol=1e-5, rtol=1e-5), "fallback-path mismatch"

    # 4) bf16 input (looser tolerance; kernel computes in f32, casts once).
    x4 = jax.random.normal(k4, (2, 8, 256), dtype=jnp.bfloat16)
    o4 = jax.block_until_ready(swiglu(x4))
    r4 = _reference(x4)
    assert jnp.allclose(o4.astype(jnp.float32), r4.astype(jnp.float32),
                        atol=1e-2, rtol=1e-2), "bf16 mismatch"

    print("KERNEL_OK")
</pallas_src>

<mosaic_0001>
module attributes {stable_mosaic.version = 11 : i64} {
  func.func @_swiglu_split_kernel(%arg0: i32, %arg1: i32, %arg2: memref<16x128xf32, #tpu.memory_space<vmem>>, %arg3: memref<16x128xf32, #tpu.memory_space<vmem>>, %arg4: memref<16x128xf32, #tpu.memory_space<vmem>>) attributes {dimension_semantics = [#tpu.dimension_semantics<parallel>, #tpu.dimension_semantics<parallel>], iteration_bounds = array<i64: 1, 1>, scalar_prefetch = 0 : i64, scratch_operands = 0 : i64, tpu.core_type = #tpu.core_type<tc>, window_params = [{transform_indices = @transform_0, window_bounds = array<i64: 16, 128>}, {transform_indices = @transform_1, window_bounds = array<i64: 16, 128>}, {transform_indices = @transform_2, window_bounds = array<i64: 16, 128>}]} {
    %c0 = arith.constant 0 : index
    %c0_0 = arith.constant 0 : index
    %0 = vector.load %arg3[%c0, %c0_0] : memref<16x128xf32, #tpu.memory_space<vmem>>, vector<16x128xf32>
    %c0_1 = arith.constant 0 : index
    %c0_2 = arith.constant 0 : index
    %1 = vector.load %arg2[%c0_1, %c0_2] : memref<16x128xf32, #tpu.memory_space<vmem>>, vector<16x128xf32>
    %2 = arith.negf %0 : vector<16x128xf32>
    %3 = math.exp %2 : vector<16x128xf32>
    %cst = arith.constant 1.000000e+00 : f32
    %4 = vector.broadcast %cst : f32 to vector<16x128xf32>
    %5 = arith.addf %4, %3 : vector<16x128xf32>
    %6 = arith.divf %4, %5 : vector<16x128xf32>
    %7 = arith.mulf %0, %6 : vector<16x128xf32>
    %8 = arith.mulf %7, %1 : vector<16x128xf32>
    %c0_3 = arith.constant 0 : index
    %c0_4 = arith.constant 0 : index
    %9 = vector.load %arg4[%c0_3, %c0_4] : memref<16x128xf32, #tpu.memory_space<vmem>>, vector<16x128xf32>
    tpu.vector_store %arg4[%c0_3, %c0_4], %8 {strides = array<i32>} : memref<16x128xf32, #tpu.memory_space<vmem>>, vector<16x128xf32>,
    return
  }
  func.func @transform_0(%arg0: i32, %arg1: i32) -> (i32, i32) {
    %c0_i32 = arith.constant 0 : i32
    return %arg0, %arg1 : i32, i32
  }
  func.func @transform_1(%arg0: i32, %arg1: i32) -> (i32, i32) {
    %c1_i32 = arith.constant 1 : i32
    %0 = arith.addi %arg1, %c1_i32 : i32
    %c0_i32 = arith.constant 0 : i32
    return %arg0, %0 : i32, i32
  }
  func.func @transform_2(%arg0: i32, %arg1: i32) -> (i32, i32) {
    %c0_i32 = arith.constant 0 : i32
    return %arg0, %arg1 : i32, i32
  }
}

</mosaic_0001>

<llo_original>
// kernel: tpu_custom_call.1
$region0: #{tpu_custom_call.1}
  #allocation0 [shape = 'u32[]', space=smem, size = 0x4, offset = 0x4, fixed_abs, tag = 'smem constant byte address 0x4 - core index']
  #allocation1 [shape = 'u32[144,128]{1,0:T(1,128)}', space=vmem, size = 0x12000, scoped, tag = 'internal scratch']
  %s0 = inlined_call_operand.hbm [shape: f32[16,256], index: 0, kind: input, shape index: {}]
  %s1 = inlined_call_operand.hbm [shape: f32[16,256], index: 1, kind: input, shape index: {}]
  %s2 = inlined_call_operand.hbm [shape: f32[16,128], index: 2, kind: output, shape index: {}]
  %s3 = sld [smem:[#allocation0]]
  $region26: #{tpu_custom_call.1} parent=0
    _
  %s5 = ssub.s32 1, %s3
  %s6 = scalar_select 0, %s5, %s3
  $region1: #{tpu_custom_call.1} parent=0
    #allocation2 [shape = 'u8[8192]{0}', space=vmem, size = 0x2000, scoped, tag = 'input window, operand 0, single buffered']
    #allocation3 [shape = 's32[1]{0}', space=sflag, size = 0x4, scoped, tag = 'scoped memory for tpu_custom_call.1']
    #allocation4 [shape = 's32[1]{0}', space=sflag, size = 0x4, scoped, tag = 'scoped memory for tpu_custom_call.1']
    #allocation5 [shape = 'u8[8192]{0}', space=vmem, size = 0x2000, scoped, tag = 'input window, operand 1, single buffered']
    #allocation6 [shape = 's32[1]{0}', space=sflag, size = 0x4, scoped, tag = 'scoped memory for tpu_custom_call.1']
    #allocation7 [shape = 'u8[8192]{0}', space=vmem, size = 0x2000, scoped, tag = 'output window, operand 0, single buffered']
    %7 = vsyncpa [#allocation3], 0
    %8 = vsyncpa [#allocation6], 0
    %9 = vsyncpa [#allocation4], 0
    // Predicated region
    $region2: #{tpu_custom_call.1} parent=1 // pred_check
      _
    $region3: #{tpu_custom_call.1} parent=1 // pred_check_branch
      %11 = sbr.rel (0) target = $region5
    $region4: #{tpu_custom_call.1} parent=1 // pred_region
      %s13 = ssub.s32 256, 256
      %14 = vsyncadd [#allocation3], %s13
      %s15 = sshll.u32 [#allocation2], 4
      %s16 = int_to_ptr.vmem [resolvable:$true] %s15
      %21 = dma.hbm_to_vmem [thread:$0]  %s0, 256, %s16, [#allocation3], 256, 128, 8
    $region5: #{tpu_custom_call.1} parent=1 // pred_fallthru
      _
    // Predicated region
    $region6: #{tpu_custom_call.1} parent=1 // pred_check
      _
    $region7: #{tpu_custom_call.1} parent=1 // pred_check_branch
      %23 = sbr.rel (0) target = $region9
    $region8: #{tpu_custom_call.1} parent=1 // pred_region
      %s24 = sadd.s32 0, 1
      %s26 = ssub.s32 256, 256
      %27 = vsyncadd [#allocation6], %s26
      %s28 = smul.addr %s24, 128
      %s29 = scalar_lea.hbm %s1, %s28
      %s30 = sshll.u32 [#allocation5], 4
      %s31 = int_to_ptr.vmem [resolvable:$true] %s30
      %36 = dma.hbm_to_vmem [thread:$0]  %s29, 256, %s31, [#allocation6], 256, 128, 8
    $region9: #{tpu_custom_call.1} parent=1 // pred_fallthru
      _
    // Predicated region
    $region10: #{tpu_custom_call.1} parent=1 // pred_check
      _
    $region11: #{tpu_custom_call.1} parent=1 // pred_check_branch
      %38 = sbr.rel (0) target = $region13
    $region12: #{tpu_custom_call.1} parent=1 // pred_region
      %39 = dma.done [#allocation3], 256
    $region13: #{tpu_custom_call.1} parent=1 // pred_fallthru
      _
    // Predicated region
    $region14: #{tpu_custom_call.1} parent=1 // pred_check
      _
    $region15: #{tpu_custom_call.1} parent=1 // pred_check_branch
      %41 = sbr.rel (0) target = $region17
    $region16: #{tpu_custom_call.1} parent=1 // pred_region
      %42 = dma.done [#allocation6], 256
    $region17: #{tpu_custom_call.1} parent=1 // pred_fallthru
      _
    %s43 = sadd.s32 0, 1
    %v44 = vld [vmem:[#allocation5] sm:$0xff]
    %v45 = vld [vmem:[#allocation5 + $0x8] sm:$0xff]
    %v46 = vld [vmem:[#allocation2] sm:$0xff]
    %v47 = vld [vmem:[#allocation2 + $0x8] sm:$0xff]
    %v48 = vxor.u32 %v44, 2147483648
    %v49 = vxor.u32 %v45, 2147483648
    %v50 = vmul.f32 %v48, 1.442695
    %v51 = vpow.pop %v50
    %v52 = vmul.f32 %v49, 1.442695
    %v53 = vpow.pop %v52
    %v54 = vadd.f32 %v51, 1.0
    %v55 = vadd.f32 %v53, 1.0
    %v56 = vrcp.pop %v54
    %v57 = vmul.f32 1.0, %v56
    %v58 = vrcp.pop %v55
    %v59 = vmul.f32 1.0, %v58
    %v60 = vmul.f32 %v44, %v57
    %v61 = vmul.f32 %v45, %v59
    %v62 = vmul.f32 %v60, %v46
    %v63 = vmul.f32 %v61, %v47
    %64 = vst [vmem:[#allocation7] sm:$0xff] %v62
    %65 = vst [vmem:[#allocation7 + $0x8] sm:$0xff] %v63
    // Predicated region
    $region18: #{tpu_custom_call.1} parent=1 // pred_check
      _
    $region19: #{tpu_custom_call.1} parent=1 // pred_check_branch
      %67 = sbr.rel (0) target = $region21
    $region20: #{tpu_custom_call.1} parent=1 // pred_region
      %s69 = ssub.s32 256, 256
      %70 = vsyncadd [#allocation4], %s69
      %s71 = sshll.u32 [#allocation7], 4
      %s72 = int_to_ptr.vmem [resolvable:$true] %s71
      %77 = dma.vmem_to_hbm [thread:$0]  %s72, 256, %s2, [#allocation4], 128, 128, 8
    $region21: #{tpu_custom_call.1} parent=1 // pred_fallthru
      _
    // Predicated region
    $region22: #{tpu_custom_call.1} parent=1 // pred_check
      _
    $region23: #{tpu_custom_call.1} parent=1 // pred_check_branch
      %79 = sbr.rel (0) target = $region25
    $region24: #{tpu_custom_call.1} parent=1 // pred_region
      %80 = dma.done [#allocation4], 256
    $region25: #{tpu_custom_call.1} parent=1 // pred_fallthru
      _
    %81 = vsyncpa [#allocation3], 1
    %82 = vsyncpa [#allocation6], 1
    %83 = vsyncpa [#allocation4], 1

</llo_original>
